<compile_context>
chip_gen: v5e
topology: v5e:2x2
jax: 0.10.0
libtpu: 0.0.40
codegen_flags: <defaults>
</compile_context>

<pallas_src>
import functools

import jax
import jax.numpy as jnp
from jax.experimental import pallas as pl
from jax.experimental.pallas import tpu as pltpu

HIDDEN = 20          # hidden width fixed by the PyTorch module
LANE = 128           # TPU lane width; hidden dim padded to this (weights only)
TB_MAX = 2048        # max batch-tile rows per grid step (multiple of 8)


def _round_up(x, m):
    return ((x + m - 1) // m) * m


def _cdiv(a, b):
    return -(-a // b)


def _fcnet_kernel(x_ref, w1_ref, w2_ref, w3_ref, b1_ref, b2_ref, b3_ref, o_ref):
    # Three MXU matmuls with f32 accumulation; explicit bias adds + ReLU on
    # the VPU (huge slack in the VALU slot here, so the adds are free).
    h = jnp.dot(x_ref[...], w1_ref[...], preferred_element_type=jnp.float32)
    h = jnp.maximum(h + b1_ref[...], 0.0)
    h = jnp.dot(h, w2_ref[...], preferred_element_type=jnp.float32)
    h = jnp.maximum(h + b2_ref[...], 0.0)
    o = jnp.dot(h, w3_ref[...], preferred_element_type=jnp.float32) + b3_ref[...]
    o_ref[...] = o.astype(o_ref.dtype)


def prepare_params(params):
    """One-time (outside the per-call path) padding of the hidden dim to 128
    lanes in the weights/biases only.  x's feature dim (16) and the output
    dim (4) are NOT padded, so HBM traffic stays at the natural byte counts.
    Padded rows/cols are exactly zero and 0 survives ReLU as 0, so the result
    is bit-for-bit the unpadded network (up to accumulation order)."""
    w1, b1 = params["w1"], params["b1"]
    w2, b2 = params["w2"], params["b2"]
    w3, b3 = params["w3"], params["b3"]
    F = w1.shape[0]
    O = w3.shape[1]
    h_p = _round_up(HIDDEN, LANE)

    w1p = jnp.zeros((F, h_p), jnp.float32).at[:, :HIDDEN].set(w1)
    w2p = jnp.zeros((h_p, h_p), jnp.float32).at[:HIDDEN, :HIDDEN].set(w2)
    w3p = jnp.zeros((h_p, O), jnp.float32).at[:HIDDEN, :].set(w3)
    b1p = jnp.zeros((1, h_p), jnp.float32).at[0, :HIDDEN].set(b1)
    b2p = jnp.zeros((1, h_p), jnp.float32).at[0, :HIDDEN].set(b2)
    b3p = b3.reshape(1, O).astype(jnp.float32)
    return {"w1": w1p, "w2": w2p, "w3": w3p, "b1": b1p, "b2": b2p, "b3": b3p}


def _batch_tiling(B, tb_max):
    """Pick (tb, b_pad): tb ~= ceil(B / n_steps) rounded to 8 sublanes so the
    trailing tile isn't mostly padding, and force >=2 grid steps when there's
    enough work so v7x's two TensorCores both get a shard (one extra ~0.35us
    step is noise on single-TC v5e/v6e)."""
    b8 = _round_up(B, 8)
    n_steps = max(1, _cdiv(b8, tb_max))
    if n_steps == 1 and b8 > 256:
        n_steps = 2
    tb = _round_up(_cdiv(b8, n_steps), 8)
    b_pad = tb * n_steps
    return tb, b_pad


@functools.partial(jax.jit, static_argnames=("tb_max",))
def fcnet_forward(x, prepared, *, tb_max=TB_MAX):
    """Run the fused 3-layer MLP on TPU via Pallas.

    x: (B, input_neurons) float32
    prepared: output of prepare_params() (padded weights/biases, computed once)
    """
    B, F = x.shape
    h_p = prepared["w1"].shape[1]
    out_n = prepared["w3"].shape[1]

    tb, b_pad = _batch_tiling(B, tb_max)

    if b_pad != B:
        x_in = jnp.zeros((b_pad, F), jnp.float32).at[:B].set(x)
    else:
        x_in = x.astype(jnp.float32)

    grid = (b_pad // tb,)

    weight_bytes = 4 * (prepared["w1"].size + prepared["w2"].size +
                        prepared["w3"].size + prepared["b1"].size +
                        prepared["b2"].size + prepared["b3"].size)
    cost = pl.CostEstimate(
        flops=2 * b_pad * (F * h_p + h_p * h_p + h_p * out_n),
        transcendentals=0,
        bytes_accessed=4 * (b_pad * F + b_pad * out_n) + weight_bytes,
    )

    # NOTE: on v6e/v7x, casting x and the weights to bf16 (keeping the f32
    # bias/ReLU epilogue) would halve input HBM bytes, but it loosens the
    # 1e-5 match vs the f32 reference, so we keep everything f32 here.
    out = pl.pallas_call(
        _fcnet_kernel,
        out_shape=jax.ShapeDtypeStruct((b_pad, out_n), jnp.float32),
        grid=grid,
        in_specs=[
            # x: one unpadded row-block per grid step (auto double-buffered).
            pl.BlockSpec((tb, F), lambda i: (i, 0)),
            # weights / biases: full-extent, constant index_map -> VMEM-resident.
            pl.BlockSpec((F, h_p), lambda i: (0, 0)),
            pl.BlockSpec((h_p, h_p), lambda i: (0, 0)),
            pl.BlockSpec((h_p, out_n), lambda i: (0, 0)),
            pl.BlockSpec((1, h_p), lambda i: (0, 0)),
            pl.BlockSpec((1, h_p), lambda i: (0, 0)),
            pl.BlockSpec((1, out_n), lambda i: (0, 0)),
        ],
        out_specs=pl.BlockSpec((tb, out_n), lambda i: (i, 0)),
        compiler_params=pltpu.CompilerParams(
            dimension_semantics=("parallel",),   # megacore sharding on v7x
        ),
        cost_estimate=cost,
    )(x_in, prepared["w1"], prepared["w2"], prepared["w3"],
      prepared["b1"], prepared["b2"], prepared["b3"])

    return out[:B] if b_pad != B else out


def init_params(key, input_neurons, output_neurons):
    """Deterministic init matching torch.nn.Linear's default scheme
    (uniform(-1/sqrt(fan_in), 1/sqrt(fan_in)) for weight and bias)."""
    dims = [(input_neurons, HIDDEN), (HIDDEN, HIDDEN), (HIDDEN, output_neurons)]
    params = {}
    for i, (fan_in, fan_out) in enumerate(dims, start=1):
        key, kw, kb = jax.random.split(key, 3)
        bound = 1.0 / jnp.sqrt(float(fan_in))
        # stored as (in, out) -> forward does x @ W + b (== nn.Linear)
        params[f"w{i}"] = jax.random.uniform(
            kw, (fan_in, fan_out), jnp.float32, -bound, bound)
        params[f"b{i}"] = jax.random.uniform(
            kb, (fan_out,), jnp.float32, -bound, bound)
    return params


def reference_forward(x, params):
    h = jnp.maximum(x @ params["w1"] + params["b1"], 0.0)
    h = jnp.maximum(h @ params["w2"] + params["b2"], 0.0)
    return h @ params["w3"] + params["b3"]


if __name__ == "__main__":
    INPUT_NEURONS = 16
    OUTPUT_NEURONS = 4
    BATCH = 8

    key = jax.random.PRNGKey(0)
    key, kx = jax.random.split(key)
    x = jax.random.normal(kx, (BATCH, INPUT_NEURONS), jnp.float32)
    params = init_params(key, INPUT_NEURONS, OUTPUT_NEURONS)
    prepared = prepare_params(params)   # padded weights/biases, computed once

    out = jax.block_until_ready(fcnet_forward(x, prepared))
    ref = reference_forward(x, params)
    assert out.shape == (BATCH, OUTPUT_NEURONS)
    assert jnp.allclose(out, ref, atol=1e-5, rtol=1e-5)

    # Larger, non-multiple-of-tile batch exercises the multi-step pipelined
    # grid path (and the >=2-step megacore split).
    key, kx2 = jax.random.split(key)
    x_big = jax.random.normal(kx2, (1000, INPUT_NEURONS), jnp.float32)
    out_big = jax.block_until_ready(fcnet_forward(x_big, prepared))
    ref_big = reference_forward(x_big, params)
    assert out_big.shape == (1000, OUTPUT_NEURONS)
    assert jnp.allclose(out_big, ref_big, atol=1e-5, rtol=1e-5)

    print("KERNEL_OK")
</pallas_src>

<mosaic_0001>
module attributes {stable_mosaic.version = 11 : i64} {
  func.func @_fcnet_kernel(%arg0: i32, %arg1: memref<8x16xf32, #tpu.memory_space<vmem>>, %arg2: memref<16x128xf32, #tpu.memory_space<vmem>>, %arg3: memref<128x128xf32, #tpu.memory_space<vmem>>, %arg4: memref<128x4xf32, #tpu.memory_space<vmem>>, %arg5: memref<1x128xf32, #tpu.memory_space<vmem>>, %arg6: memref<1x128xf32, #tpu.memory_space<vmem>>, %arg7: memref<1x4xf32, #tpu.memory_space<vmem>>, %arg8: memref<8x4xf32, #tpu.memory_space<vmem>>) attributes {dimension_semantics = [#tpu.dimension_semantics<parallel>], iteration_bounds = array<i64: 1>, scalar_prefetch = 0 : i64, scratch_operands = 0 : i64, tpu.core_type = #tpu.core_type<tc>, window_params = [{transform_indices = @transform_0, window_bounds = array<i64: 8, 16>}, {pipeline_mode = #tpu.pipeline_mode<synchronous>, transform_indices = @transform_1, window_bounds = array<i64: 16, 128>}, {pipeline_mode = #tpu.pipeline_mode<synchronous>, transform_indices = @transform_2, window_bounds = array<i64: 128, 128>}, {pipeline_mode = #tpu.pipeline_mode<synchronous>, transform_indices = @transform_3, window_bounds = array<i64: 128, 4>}, {pipeline_mode = #tpu.pipeline_mode<synchronous>, transform_indices = @transform_4, window_bounds = array<i64: 1, 128>}, {pipeline_mode = #tpu.pipeline_mode<synchronous>, transform_indices = @transform_5, window_bounds = array<i64: 1, 128>}, {pipeline_mode = #tpu.pipeline_mode<synchronous>, transform_indices = @transform_6, window_bounds = array<i64: 1, 4>}, {transform_indices = @transform_7, window_bounds = array<i64: 8, 4>}]} {
    %c0 = arith.constant 0 : index
    %c0_0 = arith.constant 0 : index
    %0 = vector.load %arg1[%c0, %c0_0] : memref<8x16xf32, #tpu.memory_space<vmem>>, vector<8x16xf32>
    %c0_1 = arith.constant 0 : index
    %c0_2 = arith.constant 0 : index
    %1 = vector.load %arg2[%c0_1, %c0_2] : memref<16x128xf32, #tpu.memory_space<vmem>>, vector<16x128xf32>
    %cst = arith.constant dense<0.000000e+00> : vector<8x128xf32>
    %2 = tpu.matmul %0, %1, %cst {dimension_numbers = #tpu.dot_dimension_numbers<[1], [0], [0], [1], [0, 0, 1, 1], [], []>} : vector<8x16xf32>, vector<16x128xf32>, vector<8x128xf32> -> vector<8x128xf32>
    %c0_3 = arith.constant 0 : index
    %c0_4 = arith.constant 0 : index
    %3 = vector.load %arg5[%c0_3, %c0_4] : memref<1x128xf32, #tpu.memory_space<vmem>>, vector<1x128xf32>
    %4 = vector.broadcast %3 : vector<1x128xf32> to vector<8x128xf32>
    %5 = arith.addf %2, %4 : vector<8x128xf32>
    %cst_5 = arith.constant 0.000000e+00 : f32
    %6 = vector.broadcast %cst_5 : f32 to vector<8x128xf32>
    %7 = arith.maximumf %5, %6 : vector<8x128xf32>
    %c0_6 = arith.constant 0 : index
    %c0_7 = arith.constant 0 : index
    %8 = vector.load %arg3[%c0_6, %c0_7] : memref<128x128xf32, #tpu.memory_space<vmem>>, vector<128x128xf32>
    %cst_8 = arith.constant dense<0.000000e+00> : vector<8x128xf32>
    %9 = tpu.matmul %7, %8, %cst_8 {dimension_numbers = #tpu.dot_dimension_numbers<[1], [0], [0], [1], [0, 0, 1, 1], [], []>} : vector<8x128xf32>, vector<128x128xf32>, vector<8x128xf32> -> vector<8x128xf32>
    %c0_9 = arith.constant 0 : index
    %c0_10 = arith.constant 0 : index
    %10 = vector.load %arg6[%c0_9, %c0_10] : memref<1x128xf32, #tpu.memory_space<vmem>>, vector<1x128xf32>
    %11 = vector.broadcast %10 : vector<1x128xf32> to vector<8x128xf32>
    %12 = arith.addf %9, %11 : vector<8x128xf32>
    %cst_11 = arith.constant 0.000000e+00 : f32
    %13 = vector.broadcast %cst_11 : f32 to vector<8x128xf32>
    %14 = arith.maximumf %12, %13 : vector<8x128xf32>
    %c0_12 = arith.constant 0 : index
    %c0_13 = arith.constant 0 : index
    %15 = vector.load %arg4[%c0_12, %c0_13] : memref<128x4xf32, #tpu.memory_space<vmem>>, vector<128x4xf32>
    %cst_14 = arith.constant dense<0.000000e+00> : vector<8x4xf32>
    %16 = tpu.matmul %14, %15, %cst_14 {dimension_numbers = #tpu.dot_dimension_numbers<[1], [0], [0], [1], [0, 0, 1, 1], [], []>} : vector<8x128xf32>, vector<128x4xf32>, vector<8x4xf32> -> vector<8x4xf32>
    %c0_15 = arith.constant 0 : index
    %c0_16 = arith.constant 0 : index
    %17 = vector.load %arg7[%c0_15, %c0_16] : memref<1x4xf32, #tpu.memory_space<vmem>>, vector<1x4xf32>
    %18 = vector.broadcast %17 : vector<1x4xf32> to vector<8x4xf32>
    %19 = arith.addf %16, %18 : vector<8x4xf32>
    %c0_17 = arith.constant 0 : index
    %c0_18 = arith.constant 0 : index
    %20 = vector.load %arg8[%c0_17, %c0_18] : memref<8x4xf32, #tpu.memory_space<vmem>>, vector<8x4xf32>
    tpu.vector_store %arg8[%c0_17, %c0_18], %19 {strides = array<i32>} : memref<8x4xf32, #tpu.memory_space<vmem>>, vector<8x4xf32>,
    return
  }
  func.func @transform_0(%arg0: i32) -> (i32, i32) {
    %c0_i32 = arith.constant 0 : i32
    %c0_i32_0 = arith.constant 0 : i32
    return %arg0, %c0_i32 : i32, i32
  }
  func.func @transform_1(%arg0: i32) -> (i32, i32) {
    %c0_i32 = arith.constant 0 : i32
    %c0_i32_0 = arith.constant 0 : i32
    %c0_i32_1 = arith.constant 0 : i32
    return %c0_i32, %c0_i32_0 : i32, i32
  }
  func.func @transform_2(%arg0: i32) -> (i32, i32) {
    %c0_i32 = arith.constant 0 : i32
    %c0_i32_0 = arith.constant 0 : i32
    %c0_i32_1 = arith.constant 0 : i32
    return %c0_i32, %c0_i32_0 : i32, i32
  }
  func.func @transform_3(%arg0: i32) -> (i32, i32) {
    %c0_i32 = arith.constant 0 : i32
    %c0_i32_0 = arith.constant 0 : i32
    %c0_i32_1 = arith.constant 0 : i32
    return %c0_i32, %c0_i32_0 : i32, i32
  }
  func.func @transform_4(%arg0: i32) -> (i32, i32) {
    %c0_i32 = arith.constant 0 : i32
    %c0_i32_0 = arith.constant 0 : i32
    %c0_i32_1 = arith.constant 0 : i32
    return %c0_i32, %c0_i32_0 : i32, i32
  }
  func.func @transform_5(%arg0: i32) -> (i32, i32) {
    %c0_i32 = arith.constant 0 : i32
    %c0_i32_0 = arith.constant 0 : i32
    %c0_i32_1 = arith.constant 0 : i32
    return %c0_i32, %c0_i32_0 : i32, i32
  }
  func.func @transform_6(%arg0: i32) -> (i32, i32) {
    %c0_i32 = arith.constant 0 : i32
    %c0_i32_0 = arith.constant 0 : i32
    %c0_i32_1 = arith.constant 0 : i32
    return %c0_i32, %c0_i32_0 : i32, i32
  }
  func.func @transform_7(%arg0: i32) -> (i32, i32) {
    %c0_i32 = arith.constant 0 : i32
    %c0_i32_0 = arith.constant 0 : i32
    return %arg0, %c0_i32 : i32, i32
  }
}

</mosaic_0001>

<llo_original>
// kernel: fcnet_forward.1
$region0: #{fcnet_forward.1}
  #allocation0 [shape = 'u32[]', space=smem, size = 0x4, offset = 0x4, fixed_abs, tag = 'smem constant byte address 0x4 - core index']
  #allocation1 [shape = 'u32[72,128]{1,0:T(1,128)}', space=vmem, size = 0x9000, scoped, tag = 'internal scratch']
  %s0 = inlined_call_operand.vmem [shape: f32[8,16], index: 0, kind: input, shape index: {}]
  %s1 = inlined_call_operand.hbm [shape: f32[16,128], index: 1, kind: input, shape index: {}]
  %s2 = inlined_call_operand.vmem [shape: f32[128,128], index: 2, kind: input, shape index: {}]
  %s3 = inlined_call_operand.vmem [shape: f32[128,4], index: 3, kind: input, shape index: {}]
  %s4 = inlined_call_operand.hbm [shape: f32[1,128], index: 4, kind: input, shape index: {}]
  %s5 = inlined_call_operand.hbm [shape: f32[1,128], index: 5, kind: input, shape index: {}]
  %s6 = inlined_call_operand.hbm [shape: f32[1,4], index: 6, kind: input, shape index: {}]
  %s7 = inlined_call_operand.vmem [shape: f32[8,4], index: 7, kind: output, shape index: {}]
  %s8 = sld [smem:[#allocation0]]
  $region54: #{fcnet_forward.1} parent=0
    _
  %s10 = ssub.s32 1, %s8
  %s11 = scalar_select 0, %s10, %s8
  $region1: #{fcnet_forward.1} parent=0
    #allocation2 [shape = 'u8[8192]{0}', space=vmem, size = 0x2000, scoped, tag = 'input window, operand 1, single buffered']
    #allocation3 [shape = 's32[1]{0}', space=sflag, size = 0x4, scoped, tag = 'scoped memory for fcnet_forward.1']
    #allocation4 [shape = 'u8[512]{0}', space=vmem, size = 0x400, scoped, tag = 'input window, operand 4, single buffered']
    #allocation5 [shape = 's32[1]{0}', space=sflag, size = 0x4, scoped, tag = 'scoped memory for fcnet_forward.1']
    #allocation6 [shape = 'u8[512]{0}', space=vmem, size = 0x400, scoped, tag = 'input window, operand 5, single buffered']
    #allocation7 [shape = 'u8[512]{0}', space=vmem, size = 0x400, scoped, tag = 'input window, operand 6, single buffered']
    #allocation8 [shape = 's32[1]{0}', space=sflag, size = 0x4, scoped, tag = 'scoped memory for fcnet_forward.1']
    %12 = vsyncpa [#allocation3], 0
    %13 = vsyncpa [#allocation5], 0
    %14 = vsyncpa [#allocation8], 0
    // Predicated region
    $region2: #{fcnet_forward.1} parent=1 // pred_check
      _
    $region3: #{fcnet_forward.1} parent=1 // pred_check_branch
      %16 = sbr.rel (0) target = $region5
    $region4: #{fcnet_forward.1} parent=1 // pred_region
      _
    $region5: #{fcnet_forward.1} parent=1 // pred_fallthru
      _
    // Predicated region
    $region6: #{fcnet_forward.1} parent=1 // pred_check
      _
    $region7: #{fcnet_forward.1} parent=1 // pred_check_branch
      %18 = sbr.rel (0) target = $region9
    $region8: #{fcnet_forward.1} parent=1 // pred_region
      %20 = vsyncadd [#allocation3], 0
      %s21 = sshll.u32 %s1, 4
      %s22 = int_to_ptr.hbm [resolvable:$true] %s21
      %s23 = sshll.u32 [#allocation2], 4
      %s24 = int_to_ptr.vmem [resolvable:$true] %s23
      %29 = dma.hbm_to_vmem [thread:$0]  %s22, 256, %s24, [#allocation3], 128, 128, 8
    $region9: #{fcnet_forward.1} parent=1 // pred_fallthru
      _
    // Predicated region
    $region10: #{fcnet_forward.1} parent=1 // pred_check
      _
    $region11: #{fcnet_forward.1} parent=1 // pred_check_branch
      %31 = sbr.rel (0) target = $region13
    $region12: #{fcnet_forward.1} parent=1 // pred_region
      _
    $region13: #{fcnet_forward.1} parent=1 // pred_fallthru
      _
    // Predicated region
    $region14: #{fcnet_forward.1} parent=1 // pred_check
      _
    $region15: #{fcnet_forward.1} parent=1 // pred_check_branch
      %33 = sbr.rel (0) target = $region17
    $region16: #{fcnet_forward.1} parent=1 // pred_region
      _
    $region17: #{fcnet_forward.1} parent=1 // pred_fallthru
      _
    // Predicated region
    $region18: #{fcnet_forward.1} parent=1 // pred_check
      _
    $region19: #{fcnet_forward.1} parent=1 // pred_check_branch
      %35 = sbr.rel (0) target = $region21
    $region20: #{fcnet_forward.1} parent=1 // pred_region
      %37 = vsyncadd [#allocation5], 0
      %s39 = sshll.u32 %s4, 4
      %s40 = int_to_ptr.hbm [resolvable:$true] %s39
      %s41 = sshll.u32 [#allocation4], 4
      %s42 = int_to_ptr.vmem [resolvable:$true] %s41
      %44 = dma.hbm_to_vmem [thread:$0]  %s40, 16, %s42, [#allocation5]
    $region21: #{fcnet_forward.1} parent=1 // pred_fallthru
      _
    // Predicated region
    $region22: #{fcnet_forward.1} parent=1 // pred_check
      _
    $region23: #{fcnet_forward.1} parent=1 // pred_check_branch
      %46 = sbr.rel (0) target = $region25
    $region24: #{fcnet_forward.1} parent=1 // pred_region
      %48 = vsyncadd [#allocation5], 0
      %s50 = sshll.u32 %s5, 4
      %s51 = int_to_ptr.hbm [resolvable:$true] %s50
      %s52 = sshll.u32 [#allocation6], 4
      %s53 = int_to_ptr.vmem [resolvable:$true] %s52
      %55 = dma.hbm_to_vmem [thread:$0]  %s51, 16, %s53, [#allocation5]
    $region25: #{fcnet_forward.1} parent=1 // pred_fallthru
      _
    // Predicated region
    $region26: #{fcnet_forward.1} parent=1 // pred_check
      _
    $region27: #{fcnet_forward.1} parent=1 // pred_check_branch
      %57 = sbr.rel (0) target = $region29
    $region28: #{fcnet_forward.1} parent=1 // pred_region
      %59 = vsyncadd [#allocation8], 0
      %s61 = sshll.u32 %s6, 4
      %s62 = int_to_ptr.hbm [resolvable:$true] %s61
      %s63 = sshll.u32 [#allocation7], 4
      %s64 = int_to_ptr.vmem [resolvable:$true] %s63
      %66 = dma.hbm_to_vmem [thread:$0]  %s62, 16, %s64, [#allocation8]
    $region29: #{fcnet_forward.1} parent=1 // pred_fallthru
      _
    // Predicated region
    $region30: #{fcnet_forward.1} parent=1 // pred_check
      _
    $region31: #{fcnet_forward.1} parent=1 // pred_check_branch
      %68 = sbr.rel (0) target = $region33
    $region32: #{fcnet_forward.1} parent=1 // pred_region
      %70 = dma.done [#allocation3], 256
    $region33: #{fcnet_forward.1} parent=1 // pred_fallthru
      _
    // Predicated region
    $region34: #{fcnet_forward.1} parent=1 // pred_check
      _
    $region35: #{fcnet_forward.1} parent=1 // pred_check_branch
      %72 = sbr.rel (0) target = $region37
    $region36: #{fcnet_forward.1} parent=1 // pred_region
      %74 = dma.done [#allocation5], 16
    $region37: #{fcnet_forward.1} parent=1 // pred_fallthru
      _
    // Predicated region
    $region38: #{fcnet_forward.1} parent=1 // pred_check
      _
    $region39: #{fcnet_forward.1} parent=1 // pred_check_branch
      %76 = sbr.rel (0) target = $region41
    $region40: #{fcnet_forward.1} parent=1 // pred_region
      %78 = dma.done [#allocation5], 16
    $region41: #{fcnet_forward.1} parent=1 // pred_fallthru
      _
    // Predicated region
    $region42: #{fcnet_forward.1} parent=1 // pred_check
      _
    $region43: #{fcnet_forward.1} parent=1 // pred_check_branch
      %80 = sbr.rel (0) target = $region45
    $region44: #{fcnet_forward.1} parent=1 // pred_region
      %82 = dma.done [#allocation8], 16
    $region45: #{fcnet_forward.1} parent=1 // pred_fallthru
      _
    %v83 = vld [vmem:[%s0] sm:$0xff]
    %v84 = vld [vmem:[#allocation2] sm:$0xff]
    %v85 = vld [vmem:[#allocation2 + $0x8] sm:$0xff]
    %v86 = vld [vmem:[#allocation4] sm:$0x1]
    %v88 = vperm.slane %v86, 0
    %vm90 = vcmask 130048
    %v92 = vsel %vm90, %v83, 0
    %94 = vmatpush.msra.mxu0 0.0
    %95 = vmatpush.msra.mxu0 0.0
    %96 = vmatpush.msra.mxu0 0.0
    %97 = vmatpush.msra.mxu0 0.0
    %98 = vmatpush.msra.mxu0 0.0
    %99 = vmatpush.msra.mxu0 0.0
    %100 = vmatpush.msra.mxu0 0.0
    %101 = vmatpush.msra.mxu0 0.0
    %102 = vmatpush.msra.mxu0 0.0
    %103 = vmatpush.msra.mxu0 0.0
    %104 = vmatpush.msra.mxu0 0.0
    %105 = vmatpush.msra.mxu0 0.0
    %106 = vmatpush.msra.mxu0 0.0
    %107 = vmatpush.msra.mxu0 0.0
    %108 = vmatpush.msra.mxu0 %v85
    %109 = vmatpush.msra.mxu0 %v84
    %110 = vmatmul.f32.gmra.mxu0 %v92
    %v111 = vpop.f32.mrf.mxu0
    %v112 = vadd.f32 %v88, %v111
    %113 = vdwg.mxu0
    %v114 = vmax.f32 %v112, 0.0
    %v115 = vld [vmem:[%s2] sm:$0xff]
    %v116 = vld [vmem:[%s2 + $0x8] sm:$0xff]
    %v117 = vld [vmem:[%s2 + $0x10] sm:$0xff]
    %v118 = vld [vmem:[%s2 + $0x18] sm:$0xff]
    %v119 = vld [vmem:[%s2 + $0x20] sm:$0xff]
    %v120 = vld [vmem:[%s2 + $0x28] sm:$0xff]
    %v121 = vld [vmem:[%s2 + $0x30] sm:$0xff]
    %v122 = vld [vmem:[%s2 + $0x38] sm:$0xff]
    %v123 = vld [vmem:[%s2 + $0x40] sm:$0xff]
    %v124 = vld [vmem:[%s2 + $0x48] sm:$0xff]
    %v125 = vld [vmem:[%s2 + $0x50] sm:$0xff]
    %v126 = vld [vmem:[%s2 + $0x58] sm:$0xff]
    %v127 = vld [vmem:[%s2 + $0x60] sm:$0xff]
    %v128 = vld [vmem:[%s2 + $0x68] sm:$0xff]
    %v129 = vld [vmem:[%s2 + $0x70] sm:$0xff]
    %v130 = vld [vmem:[%s2 + $0x78] sm:$0xff]
    %v131 = vld [vmem:[#allocation6] sm:$0x1]
    %v133 = vperm.slane %v131, 0
    %135 = vmatpush.msra.mxu0 %v130
    %136 = vmatpush.msra.mxu0 %v129
    %137 = vmatpush.msra.mxu0 %v128
    %138 = vmatpush.msra.mxu0 %v127
    %139 = vmatpush.msra.mxu0 %v126
    %140 = vmatpush.msra.mxu0 %v125
    %141 = vmatpush.msra.mxu0 %v124
    %142 = vmatpush.msra.mxu0 %v123
    %143 = vmatpush.msra.mxu0 %v122
    %144 = vmatpush.msra.mxu0 %v121
    %145 = vmatpush.msra.mxu0 %v120
    %146 = vmatpush.msra.mxu0 %v119
    %147 = vmatpush.msra.mxu0 %v118
    %148 = vmatpush.msra.mxu0 %v117
    %149 = vmatpush.msra.mxu0 %v116
    %150 = vmatpush.msra.mxu0 %v115
    %151 = vmatmul.f32.gmra.mxu0 %v114
    %v152 = vpop.f32.mrf.mxu0
    %v153 = vadd.f32 %v133, %v152
    %154 = vdwg.mxu0
    %v155 = vmax.f32 %v153, 0.0
    %v156 = vld [vmem:[%s3] sm:$0xff]
    %v157 = vld [vmem:[%s3 + $0x8] sm:$0xff]
    %v158 = vld [vmem:[%s3 + $0x10] sm:$0xff]
    %v159 = vld [vmem:[%s3 + $0x18] sm:$0xff]
    %v160 = vld [vmem:[%s3 + $0x20] sm:$0xff]
    %v161 = vld [vmem:[%s3 + $0x28] sm:$0xff]
    %v162 = vld [vmem:[%s3 + $0x30] sm:$0xff]
    %v163 = vld [vmem:[%s3 + $0x38] sm:$0xff]
    %v164 = vld [vmem:[%s3 + $0x40] sm:$0xff]
    %v165 = vld [vmem:[%s3 + $0x48] sm:$0xff]
    %v166 = vld [vmem:[%s3 + $0x50] sm:$0xff]
    %v167 = vld [vmem:[%s3 + $0x58] sm:$0xff]
    %v168 = vld [vmem:[%s3 + $0x60] sm:$0xff]
    %v169 = vld [vmem:[%s3 + $0x68] sm:$0xff]
    %v170 = vld [vmem:[%s3 + $0x70] sm:$0xff]
    %v171 = vld [vmem:[%s3 + $0x78] sm:$0xff]
    %v172 = vld [vmem:[#allocation7] sm:$0x1]
    %v174 = vperm.slane %v172, 0
    %176 = vmatpush.msra.mxu0 %v171
    %177 = vmatpush.msra.mxu0 %v170
    %178 = vmatpush.msra.mxu0 %v169
    %179 = vmatpush.msra.mxu0 %v168
    %180 = vmatpush.msra.mxu0 %v167
    %181 = vmatpush.msra.mxu0 %v166
    %182 = vmatpush.msra.mxu0 %v165
    %183 = vmatpush.msra.mxu0 %v164
    %184 = vmatpush.msra.mxu0 %v163
    %185 = vmatpush.msra.mxu0 %v162
    %186 = vmatpush.msra.mxu0 %v161
    %187 = vmatpush.msra.mxu0 %v160
    %188 = vmatpush.msra.mxu0 %v159
    %189 = vmatpush.msra.mxu0 %v158
    %190 = vmatpush.msra.mxu0 %v157
    %191 = vmatpush.msra.mxu0 %v156
    %192 = vmatmul.f32.gmra.mxu0 %v155
    %v193 = vpop.f32.mrf.mxu0
    %v194 = vadd.f32 %v174, %v193
    %195 = vdwg.mxu0
    %vm196 = vcmask 31744
    %197 = vst.msk [vmem:[%s7] sm:$0xff] %vm196, %v194
    // Predicated region
    $region46: #{fcnet_forward.1} parent=1 // pred_check
      _
    $region47: #{fcnet_forward.1} parent=1 // pred_check_branch
      %199 = sbr.rel (0) target = $region49
    $region48: #{fcnet_forward.1} parent=1 // pred_region
      _
    $region49: #{fcnet_forward.1} parent=1 // pred_fallthru
      _
    // Predicated region
    $region50: #{fcnet_forward.1} parent=1 // pred_check
      _
    $region51: #{fcnet_forward.1} parent=1 // pred_check_branch
      %201 = sbr.rel (0) target = $region53
    $region52: #{fcnet_forward.1} parent=1 // pred_region
      _
    $region53: #{fcnet_forward.1} parent=1 // pred_fallthru
      _
    %202 = vsyncpa [#allocation3], 1
    %203 = vsyncpa [#allocation5], 1
    %204 = vsyncpa [#allocation8], 1

</llo_original>
